<compile_context>
chip_gen: v7x
topology: tpu7x:2x2x1
jax: 0.10.0
libtpu: 0.0.40
codegen_flags: <defaults>
</compile_context>

<pallas_src>
import jax
import jax.numpy as jnp
from jax.experimental import pallas as pl
from jax.experimental.pallas import tpu as pltpu


def _round_up(x, m):
    return ((x + m - 1) // m) * m


def _is_v7x():
    try:
        kind = jax.devices()[0].device_kind.lower()
        return ("v7" in kind) or ("7x" in kind)
    except Exception:
        return False


def critic_kernel(x_ref, w1_ref, b1_ref, w2_ref, b2_ref, w3_ref, b3_ref, o_ref):
    # Layer 1: in-kernel f32 -> bf16 cast (VPU), MXU matmul with f32 accumulation.
    # K = 784 is not a multiple of 128; Mosaic masks the ragged lanes.
    x_bf = x_ref[...].astype(jnp.bfloat16)
    h1 = jnp.dot(x_bf, w1_ref[...], preferred_element_type=jnp.float32)
    h1 = h1 + b1_ref[...]
    h1 = jnp.maximum(h1, 0.2 * h1)          # LeakyReLU(0.2)

    # Layer 2: bf16 MXU matmul, f32 accumulation.
    h2 = jnp.dot(h1.astype(jnp.bfloat16), w2_ref[...],
                 preferred_element_type=jnp.float32)
    h2 = h2 + b2_ref[...]
    h2 = jnp.maximum(h2, 0.2 * h2)          # LeakyReLU(0.2)

    # Layer 3 (128 -> 1): VPU multiply + cross-lane reduce instead of a
    # degenerate (tb,128)@(128,1) matmul.  Result is stored lane-dense as
    # a (1, tb) row (the (tb,) -> (1, tb) relayout rides the XLU slot).
    logit = jnp.sum(h2 * w3_ref[...], axis=-1) + b3_ref[0]   # (tb,)
    o_ref[...] = logit.reshape(1, -1).astype(o_ref.dtype)    # (1, tb)


def critic_forward(x, params, *, batch_tile=None):
    """x: (B, C, H, W) float32 NCHW. Returns (B, 1) float32."""
    w1, b1, w2, b2, w3, b3 = params
    B = x.shape[0]
    input_dim, hidden_dim = w1.shape
    output_dim = w3.shape[1]
    assert output_dim == 1

    # flatten(1) -- row-major flatten of all non-batch dims (PyTorch semantics).
    x2d = x.reshape(B, -1)
    assert x2d.shape[1] == input_dim

    v7x = _is_v7x()
    if batch_tile is None:
        batch_tile = 2048 if v7x else 1024

    # --- batch tiling --------------------------------------------------------
    # Round to 16 rows (bf16 sublane packing of the in-kernel cast).
    B16 = _round_up(B, 16)
    tb = min(_round_up(batch_tile, 128), B16)
    # v7x has 2 TensorCores: when the whole (large) batch would otherwise be a
    # single tile, split it into two even 128-aligned tiles so both TCs work.
    if v7x and tb >= B16 and B16 >= 256:
        tb = _round_up((B16 + 1) // 2, 128)
    B_pad = _round_up(B, tb)
    if B_pad != B:
        x2d = jnp.pad(x2d, ((0, B_pad - B), (0, 0)))

    # --- dtype prep: bf16 MXU weights (tiny, one-time); x stays f32 in HBM ---
    w1 = w1.astype(jnp.bfloat16)                              # (784, 128)
    w2 = w2.astype(jnp.bfloat16)                              # (128, 128)
    b1 = b1.reshape(1, hidden_dim).astype(jnp.float32)
    b2 = b2.reshape(1, hidden_dim).astype(jnp.float32)
    w3_row = w3.reshape(1, hidden_dim).astype(jnp.float32)    # used on the VPU
    b3_s = b3.reshape(-1).astype(jnp.float32)                 # scalar via SMEM

    grid = (B_pad // tb,)

    # Advisory cost hint for the XLA scheduler.
    flops = 2 * B_pad * (input_dim * hidden_dim + hidden_dim * hidden_dim + hidden_dim)
    bytes_accessed = (B_pad * input_dim * 4 + B_pad * 4
                      + input_dim * hidden_dim * 2 + hidden_dim * hidden_dim * 2
                      + 3 * hidden_dim * 4 + 4)
    cost = pl.CostEstimate(flops=int(flops), transcendentals=0,
                           bytes_accessed=int(bytes_accessed))

    out = pl.pallas_call(
        critic_kernel,
        out_shape=jax.ShapeDtypeStruct((1, B_pad), jnp.float32),
        grid_spec=pltpu.PrefetchScalarGridSpec(
            num_scalar_prefetch=0,
            grid=grid,
            in_specs=[
                # x tile: full-K f32 block; cast to bf16 in-kernel.
                pl.BlockSpec((tb, input_dim), lambda i: (i, 0)),
                pl.BlockSpec((input_dim, hidden_dim), lambda i: (0, 0)),   # w1 bf16
                pl.BlockSpec((1, hidden_dim), lambda i: (0, 0)),           # b1 f32
                pl.BlockSpec((hidden_dim, hidden_dim), lambda i: (0, 0)),  # w2 bf16
                pl.BlockSpec((1, hidden_dim), lambda i: (0, 0)),           # b2 f32
                pl.BlockSpec((1, hidden_dim), lambda i: (0, 0)),           # w3 row f32
                pl.BlockSpec(memory_space=pltpu.MemorySpace.SMEM),         # b3 scalar
            ],
            # Lane-dense output: one (1, tb) row per grid step.
            out_specs=pl.BlockSpec((1, tb), lambda i: (0, i)),
        ),
        compiler_params=pltpu.CompilerParams(
            dimension_semantics=("parallel",),
            # ~20 MB peak at tb=2048 (x f32 double-buffered + activations);
            # comfortably under even v7x's 64 MiB physical VMEM.
            vmem_limit_bytes=32 * 1024 * 1024,
        ),
        cost_estimate=cost,
    )(x2d, w1, b1, w2, b2, w3_row, b3_s)

    return out[0, :B].reshape(B, output_dim)


def init_params(key, input_dim, hidden_dim, output_dim):
    """nn.Linear-style init: U(-1/sqrt(fan_in), 1/sqrt(fan_in)); W stored (fan_in, fan_out)."""
    ks = jax.random.split(key, 6)

    def linear(kw, kb, fan_in, fan_out):
        bound = 1.0 / jnp.sqrt(fan_in)
        w = jax.random.uniform(kw, (fan_in, fan_out), jnp.float32, -bound, bound)
        b = jax.random.uniform(kb, (1, fan_out), jnp.float32, -bound, bound)
        return w, b

    w1, b1 = linear(ks[0], ks[1], input_dim, hidden_dim)
    w2, b2 = linear(ks[2], ks[3], hidden_dim, hidden_dim)
    w3, b3 = linear(ks[4], ks[5], hidden_dim, output_dim)
    return (w1, b1, w2, b2, w3, b3)


def critic_reference(x, params):
    """Pure-JAX (f32) reference of the PyTorch forward."""
    w1, b1, w2, b2, w3, b3 = params
    h = x.reshape(x.shape[0], -1)
    h = h @ w1 + b1
    h = jnp.where(h > 0, h, 0.2 * h)
    h = h @ w2 + b2
    h = jnp.where(h > 0, h, 0.2 * h)
    return h @ w3 + b3


if __name__ == "__main__":
    # Small shapes consistent with the module defaults: input_dim = 28*28.
    B, C, H, W = 2, 1, 28, 28
    input_dim, hidden_dim, output_dim = C * H * W, 128, 1

    key = jax.random.PRNGKey(0)
    kx, kp = jax.random.split(key)
    x = jax.random.normal(kx, (B, C, H, W), dtype=jnp.float32)
    params = init_params(kp, input_dim, hidden_dim, output_dim)

    out = critic_forward(x, params)
    out = jax.block_until_ready(out)

    ref = critic_reference(x, params)
    assert out.shape == (B, output_dim), out.shape
    # bf16 MXU operands with f32 accumulation: tolerance reflects bf16 rounding.
    assert jnp.allclose(out, ref, atol=2e-2, rtol=2e-2), (out, ref)

    print("KERNEL_OK")
</pallas_src>

<mosaic_0001>
module attributes {stable_mosaic.version = 11 : i64} {
  func.func @critic_kernel(%arg0: i32, %arg1: memref<16x784xf32, #tpu.memory_space<vmem>>, %arg2: memref<784x128xbf16, #tpu.memory_space<vmem>>, %arg3: memref<1x128xf32, #tpu.memory_space<vmem>>, %arg4: memref<128x128xbf16, #tpu.memory_space<vmem>>, %arg5: memref<1x128xf32, #tpu.memory_space<vmem>>, %arg6: memref<1x128xf32, #tpu.memory_space<vmem>>, %arg7: memref<1xf32, #tpu.memory_space<smem>>, %arg8: memref<1x16xf32, #tpu.memory_space<vmem>>) attributes {dimension_semantics = [#tpu.dimension_semantics<parallel>], iteration_bounds = array<i64: 1>, scalar_prefetch = 0 : i64, scratch_operands = 0 : i64, tpu.core_type = #tpu.core_type<tc>, window_params = [{transform_indices = @transform_0, window_bounds = array<i64: 16, 784>}, {pipeline_mode = #tpu.pipeline_mode<synchronous>, transform_indices = @transform_1, window_bounds = array<i64: 784, 128>}, {pipeline_mode = #tpu.pipeline_mode<synchronous>, transform_indices = @transform_2, window_bounds = array<i64: 1, 128>}, {pipeline_mode = #tpu.pipeline_mode<synchronous>, transform_indices = @transform_3, window_bounds = array<i64: 128, 128>}, {pipeline_mode = #tpu.pipeline_mode<synchronous>, transform_indices = @transform_4, window_bounds = array<i64: 1, 128>}, {pipeline_mode = #tpu.pipeline_mode<synchronous>, transform_indices = @transform_5, window_bounds = array<i64: 1, 128>}, {transform_indices = @transform_6, window_bounds = array<i64: 1>}, {transform_indices = @transform_7, window_bounds = array<i64: 1, 16>}]} {
    %c0 = arith.constant 0 : index
    %c0_0 = arith.constant 0 : index
    %0 = vector.load %arg1[%c0, %c0_0] : memref<16x784xf32, #tpu.memory_space<vmem>>, vector<16x784xf32>
    %1 = arith.truncf %0 : vector<16x784xf32> to vector<16x784xbf16>
    %c0_1 = arith.constant 0 : index
    %c0_2 = arith.constant 0 : index
    %2 = vector.load %arg2[%c0_1, %c0_2] : memref<784x128xbf16, #tpu.memory_space<vmem>>, vector<784x128xbf16>
    %cst = arith.constant dense<0.000000e+00> : vector<16x128xf32>
    %3 = tpu.matmul %1, %2, %cst {dimension_numbers = #tpu.dot_dimension_numbers<[1], [0], [0], [1], [0, 0, 1, 1], [], []>} : vector<16x784xbf16>, vector<784x128xbf16>, vector<16x128xf32> -> vector<16x128xf32>
    %c0_3 = arith.constant 0 : index
    %c0_4 = arith.constant 0 : index
    %4 = vector.load %arg3[%c0_3, %c0_4] : memref<1x128xf32, #tpu.memory_space<vmem>>, vector<1x128xf32>
    %5 = vector.broadcast %4 : vector<1x128xf32> to vector<16x128xf32>
    %6 = arith.addf %3, %5 : vector<16x128xf32>
    %cst_5 = arith.constant 2.000000e-01 : f32
    %7 = vector.broadcast %cst_5 : f32 to vector<16x128xf32>
    %8 = arith.mulf %7, %6 : vector<16x128xf32>
    %9 = arith.maximumf %6, %8 : vector<16x128xf32>
    %10 = arith.truncf %9 : vector<16x128xf32> to vector<16x128xbf16>
    %c0_6 = arith.constant 0 : index
    %c0_7 = arith.constant 0 : index
    %11 = vector.load %arg4[%c0_6, %c0_7] : memref<128x128xbf16, #tpu.memory_space<vmem>>, vector<128x128xbf16>
    %cst_8 = arith.constant dense<0.000000e+00> : vector<16x128xf32>
    %12 = tpu.matmul %10, %11, %cst_8 {dimension_numbers = #tpu.dot_dimension_numbers<[1], [0], [0], [1], [0, 0, 1, 1], [], []>} : vector<16x128xbf16>, vector<128x128xbf16>, vector<16x128xf32> -> vector<16x128xf32>
    %c0_9 = arith.constant 0 : index
    %c0_10 = arith.constant 0 : index
    %13 = vector.load %arg5[%c0_9, %c0_10] : memref<1x128xf32, #tpu.memory_space<vmem>>, vector<1x128xf32>
    %14 = vector.broadcast %13 : vector<1x128xf32> to vector<16x128xf32>
    %15 = arith.addf %12, %14 : vector<16x128xf32>
    %cst_11 = arith.constant 2.000000e-01 : f32
    %16 = vector.broadcast %cst_11 : f32 to vector<16x128xf32>
    %17 = arith.mulf %16, %15 : vector<16x128xf32>
    %18 = arith.maximumf %15, %17 : vector<16x128xf32>
    %c0_12 = arith.constant 0 : index
    %c0_13 = arith.constant 0 : index
    %19 = vector.load %arg6[%c0_12, %c0_13] : memref<1x128xf32, #tpu.memory_space<vmem>>, vector<1x128xf32>
    %20 = vector.broadcast %19 : vector<1x128xf32> to vector<16x128xf32>
    %21 = arith.mulf %18, %20 : vector<16x128xf32>
    %cst_14 = arith.constant dense<0.000000e+00> : vector<16xf32>
    %22 = vector.multi_reduction <add>, %21, %cst_14 [1] : vector<16x128xf32> to vector<16xf32>
    %c0_15 = arith.constant 0 : index
    %23 = memref.load %arg7[%c0_15] : memref<1xf32, #tpu.memory_space<smem>>
    %24 = vector.broadcast %23 : f32 to vector<16xf32>
    %25 = arith.addf %22, %24 : vector<16xf32>
    %26 = vector.shape_cast %25 : vector<16xf32> to vector<1x16xf32>
    %c0_16 = arith.constant 0 : index
    %c0_17 = arith.constant 0 : index
    %27 = vector.load %arg8[%c0_16, %c0_17] : memref<1x16xf32, #tpu.memory_space<vmem>>, vector<1x16xf32>
    tpu.vector_store %arg8[%c0_16, %c0_17], %26 {strides = array<i32>} : memref<1x16xf32, #tpu.memory_space<vmem>>, vector<1x16xf32>,
    return
  }
  func.func @transform_0(%arg0: i32) -> (i32, i32) {
    %c0_i32 = arith.constant 0 : i32
    %c0_i32_0 = arith.constant 0 : i32
    return %arg0, %c0_i32 : i32, i32
  }
  func.func @transform_1(%arg0: i32) -> (i32, i32) {
    %c0_i32 = arith.constant 0 : i32
    %c0_i32_0 = arith.constant 0 : i32
    %c0_i32_1 = arith.constant 0 : i32
    return %c0_i32, %c0_i32_0 : i32, i32
  }
  func.func @transform_2(%arg0: i32) -> (i32, i32) {
    %c0_i32 = arith.constant 0 : i32
    %c0_i32_0 = arith.constant 0 : i32
    %c0_i32_1 = arith.constant 0 : i32
    return %c0_i32, %c0_i32_0 : i32, i32
  }
  func.func @transform_3(%arg0: i32) -> (i32, i32) {
    %c0_i32 = arith.constant 0 : i32
    %c0_i32_0 = arith.constant 0 : i32
    %c0_i32_1 = arith.constant 0 : i32
    return %c0_i32, %c0_i32_0 : i32, i32
  }
  func.func @transform_4(%arg0: i32) -> (i32, i32) {
    %c0_i32 = arith.constant 0 : i32
    %c0_i32_0 = arith.constant 0 : i32
    %c0_i32_1 = arith.constant 0 : i32
    return %c0_i32, %c0_i32_0 : i32, i32
  }
  func.func @transform_5(%arg0: i32) -> (i32, i32) {
    %c0_i32 = arith.constant 0 : i32
    %c0_i32_0 = arith.constant 0 : i32
    %c0_i32_1 = arith.constant 0 : i32
    return %c0_i32, %c0_i32_0 : i32, i32
  }
  func.func @transform_6(%arg0: i32) -> i32 {
    %c0_i32 = arith.constant 0 : i32
    %c0_i32_0 = arith.constant 0 : i32
    return %c0_i32 : i32
  }
  func.func @transform_7(%arg0: i32) -> (i32, i32) {
    %c0_i32 = arith.constant 0 : i32
    %c0_i32_0 = arith.constant 0 : i32
    return %c0_i32, %arg0 : i32, i32
  }
}

</mosaic_0001>

<llo_original>
// kernel: tpu_custom_call.1
$region0: #{tpu_custom_call.1}
  #allocation0 [shape = 'u32[]', space=smem, size = 0x4, offset = 0x4, fixed_abs, tag = 'smem constant byte address 0x4 - core index']
  #allocation1 [shape = 'u32[144,128]{1,0:T(1,128)}', space=vmem, size = 0x12000, scoped, tag = 'internal scratch']
  #allocation2 [shape = 'f32[1]{0:T(128)S(6)}', space=smem, size = 0x200, scoped, tag = 'scoped memory for tpu_custom_call.1']
  %s0 = inlined_call_operand.hbm [shape: f32[16,784], index: 0, kind: input, shape index: {}]
  %s1 = inlined_call_operand.hbm [shape: bf16[784,128], index: 1, kind: input, shape index: {}]
  %s2 = inlined_call_operand.vmem [shape: f32[1,128], index: 2, kind: input, shape index: {}]
  %s3 = inlined_call_operand.hbm [shape: bf16[128,128], index: 3, kind: input, shape index: {}]
  %s4 = inlined_call_operand.vmem [shape: f32[1,128], index: 4, kind: input, shape index: {}]
  %s5 = inlined_call_operand.vmem [shape: f32[1,128], index: 5, kind: input, shape index: {}]
  %s6 = inlined_call_operand.<no memory space> [shape: f32[1], index: 6, kind: input, shape index: {}]
  %s7 = inlined_call_operand.hbm [shape: f32[1,16], index: 7, kind: output, shape index: {}]
  %s8 = sld [smem:[#allocation0]]
  $region50: #{tpu_custom_call.1} parent=0
    _
  %s10 = ssub.s32 1, %s8
  %s11 = scalar_select 0, %s10, %s8
  %12 = sst [smem:[#allocation2]] %s6
  $region1: #{tpu_custom_call.1} parent=0
    #allocation3 [shape = 'u8[57344]{0}', space=vmem, size = 0xe000, scoped, tag = 'input window, operand 0, single buffered']
    #allocation4 [shape = 's32[1]{0}', space=sflag, size = 0x4, scoped, tag = 'scoped memory for tpu_custom_call.1']
    #allocation5 [shape = 's32[1]{0}', space=sflag, size = 0x4, scoped, tag = 'scoped memory for tpu_custom_call.1']
    #allocation6 [shape = 'u8[200704]{0}', space=vmem, size = 0x31000, scoped, tag = 'input window, operand 1, single buffered']
    #allocation7 [shape = 's32[1]{0}', space=sflag, size = 0x4, scoped, tag = 'scoped memory for tpu_custom_call.1']
    #allocation8 [shape = 'u8[32768]{0}', space=vmem, size = 0x8000, scoped, tag = 'input window, operand 3, single buffered']
    #allocation9 [shape = 'u8[512]{0}', space=vmem, size = 0x400, scoped, tag = 'output window, operand 0, single buffered']
    %13 = vsyncpa [#allocation4], 0
    %14 = vsyncpa [#allocation7], 0
    %15 = vsyncpa [#allocation5], 0
    // Predicated region
    $region2: #{tpu_custom_call.1} parent=1 // pred_check
      _
    $region3: #{tpu_custom_call.1} parent=1 // pred_check_branch
      %17 = sbr.rel (0) target = $region5
    $region4: #{tpu_custom_call.1} parent=1 // pred_region
      %s19 = ssub.s32 1792, 1792
      %20 = vsyncadd [#allocation4], %s19
      %s21 = sshll.u32 [#allocation3], 4
      %s22 = int_to_ptr.vmem [resolvable:$true] %s21
      %27 = dma.hbm_to_vmem [thread:$0]  %s0, 1792, %s22, [#allocation4], 896, 896, 56
    $region5: #{tpu_custom_call.1} parent=1 // pred_fallthru
      _
    // Predicated region
    $region6: #{tpu_custom_call.1} parent=1 // pred_check
      _
    $region7: #{tpu_custom_call.1} parent=1 // pred_check_branch
      %29 = sbr.rel (0) target = $region9
    $region8: #{tpu_custom_call.1} parent=1 // pred_region
      %s31 = ssub.s32 6272, 6272
      %32 = vsyncadd [#allocation7], %s31
      %s33 = sshll.u32 [#allocation6], 4
      %s34 = int_to_ptr.vmem [resolvable:$true] %s33
      %39 = dma.hbm_to_vmem [thread:$0]  %s1, 6272, %s34, [#allocation7], 64, 64, 4
    $region9: #{tpu_custom_call.1} parent=1 // pred_fallthru
      _
    // Predicated region
    $region10: #{tpu_custom_call.1} parent=1 // pred_check
      _
    $region11: #{tpu_custom_call.1} parent=1 // pred_check_branch
      %41 = sbr.rel (0) target = $region13
    $region12: #{tpu_custom_call.1} parent=1 // pred_region
      _
    $region13: #{tpu_custom_call.1} parent=1 // pred_fallthru
      _
    // Predicated region
    $region14: #{tpu_custom_call.1} parent=1 // pred_check
      _
    $region15: #{tpu_custom_call.1} parent=1 // pred_check_branch
      %43 = sbr.rel (0) target = $region17
    $region16: #{tpu_custom_call.1} parent=1 // pred_region
      %s45 = ssub.s32 1024, 1024
      %46 = vsyncadd [#allocation7], %s45
      %s47 = sshll.u32 [#allocation8], 4
      %s48 = int_to_ptr.vmem [resolvable:$true] %s47
      %53 = dma.hbm_to_vmem [thread:$0]  %s3, 1024, %s48, [#allocation7], 64, 64, 4
    $region17: #{tpu_custom_call.1} parent=1 // pred_fallthru
      _
    // Predicated region
    $region18: #{tpu_custom_call.1} parent=1 // pred_check
      _
    $region19: #{tpu_custom_call.1} parent=1 // pred_check_branch
      %55 = sbr.rel (0) target = $region21
    $region20: #{tpu_custom_call.1} parent=1 // pred_region
      _
    $region21: #{tpu_custom_call.1} parent=1 // pred_fallthru
      _
    // Predicated region
    $region22: #{tpu_custom_call.1} parent=1 // pred_check
      _
    $region23: #{tpu_custom_call.1} parent=1 // pred_check_branch
      %57 = sbr.rel (0) target = $region25
    $region24: #{tpu_custom_call.1} parent=1 // pred_region
      _
    $region25: #{tpu_custom_call.1} parent=1 // pred_fallthru
      _
    // Predicated region
    $region26: #{tpu_custom_call.1} parent=1 // pred_check
      _
    $region27: #{tpu_custom_call.1} parent=1 // pred_check_branch
      %59 = sbr.rel (0) target = $region29
    $region28: #{tpu_custom_call.1} parent=1 // pred_region
      _
    $region29: #{tpu_custom_call.1} parent=1 // pred_fallthru
      _
    // Predicated region
    $region30: #{tpu_custom_call.1} parent=1 // pred_check
      _
    $region31: #{tpu_custom_call.1} parent=1 // pred_check_branch
      %61 = sbr.rel (0) target = $region33
    $region32: #{tpu_custom_call.1} parent=1 // pred_region
      %62 = dma.done [#allocation4], 1792
    $region33: #{tpu_custom_call.1} parent=1 // pred_fallthru
      _
    // Predicated region
    $region34: #{tpu_custom_call.1} parent=1 // pred_check
      _
    $region35: #{tpu_custom_call.1} parent=1 // pred_check_branch
      %64 = sbr.rel (0) target = $region37
    $region36: #{tpu_custom_call.1} parent=1 // pred_region
      %65 = dma.done [#allocation7], 6272
    $region37: #{tpu_custom_call.1} parent=1 // pred_fallthru
      _
    // Predicated region
    $region38: #{tpu_custom_call.1} parent=1 // pred_check
      _
    $region39: #{tpu_custom_call.1} parent=1 // pred_check_branch
      %67 = sbr.rel (0) target = $region41
    $region40: #{tpu_custom_call.1} parent=1 // pred_region
      %68 = dma.done [#allocation7], 1024
    $region41: #{tpu_custom_call.1} parent=1 // pred_fallthru
      _
    %v70 = vld [vmem:[#allocation3] sm:$0xff]
    %v71 = vld [vmem:[#allocation3 + $0x8] sm:$0xff]
    %v72 = vld [vmem:[#allocation3 + $0x10] sm:$0xff]
    %v73 = vld [vmem:[#allocation3 + $0x18] sm:$0xff]
    %v74 = vld [vmem:[#allocation3 + $0x20] sm:$0xff]
    %v75 = vld [vmem:[#allocation3 + $0x28] sm:$0xff]
    %v76 = vld [vmem:[#allocation3 + $0x30] sm:$0xff]
    %v77 = vld [vmem:[#allocation3 + $0x38] sm:$0xff]
    %v78 = vld [vmem:[#allocation3 + $0x40] sm:$0xff]
    %v79 = vld [vmem:[#allocation3 + $0x48] sm:$0xff]
    %v80 = vld [vmem:[#allocation3 + $0x50] sm:$0xff]
    %v81 = vld [vmem:[#allocation3 + $0x58] sm:$0xff]
    %v82 = vld [vmem:[#allocation3 + $0x60] sm:$0xff]
    %v83 = vld [vmem:[#allocation3 + $0x68] sm:$0xff]
    %v84 = vpack.c.bf16 %v77, %v70
    %v85 = vpack.c.bf16 %v78, %v71
    %v86 = vpack.c.bf16 %v79, %v72
    %v87 = vpack.c.bf16 %v80, %v73
    %v88 = vpack.c.bf16 %v81, %v74
    %v89 = vpack.c.bf16 %v82, %v75
    %v90 = vpack.c.bf16 %v83, %v76
    %v91 = vld [vmem:[#allocation6] sm:$0xf]
    %v92 = vld [vmem:[#allocation6 + $0x4] sm:$0xf]
    %v93 = vld [vmem:[#allocation6 + $0x8] sm:$0xf]
    %v94 = vld [vmem:[#allocation6 + $0xc] sm:$0xf]
    %v95 = vld [vmem:[#allocation6 + $0x10] sm:$0xf]
    %v96 = vld [vmem:[#allocation6 + $0x14] sm:$0xf]
    %v97 = vld [vmem:[#allocation6 + $0x18] sm:$0xf]
    %v98 = vld [vmem:[#allocation6 + $0x1c] sm:$0xf]
    %v99 = vld [vmem:[#allocation6 + $0x20] sm:$0xf]
    %v100 = vld [vmem:[#allocation6 + $0x24] sm:$0xf]
    %v101 = vld [vmem:[#allocation6 + $0x28] sm:$0xf]
    %v102 = vld [vmem:[#allocation6 + $0x2c] sm:$0xf]
    %v103 = vld [vmem:[#allocation6 + $0x30] sm:$0xf]
    %v104 = vld [vmem:[#allocation6 + $0x34] sm:$0xf]
    %v105 = vld [vmem:[#allocation6 + $0x38] sm:$0xf]
    %v106 = vld [vmem:[#allocation6 + $0x3c] sm:$0xf]
    %v107 = vld [vmem:[#allocation6 + $0x40] sm:$0xf]
    %v108 = vld [vmem:[#allocation6 + $0x44] sm:$0xf]
    %v109 = vld [vmem:[#allocation6 + $0x48] sm:$0xf]
    %v110 = vld [vmem:[#allocation6 + $0x4c] sm:$0xf]
    %v111 = vld [vmem:[#allocation6 + $0x50] sm:$0xf]
    %v112 = vld [vmem:[#allocation6 + $0x54] sm:$0xf]
    %v113 = vld [vmem:[#allocation6 + $0x58] sm:$0xf]
    %v114 = vld [vmem:[#allocation6 + $0x5c] sm:$0xf]
    %v115 = vld [vmem:[#allocation6 + $0x60] sm:$0xf]
    %v116 = vld [vmem:[#allocation6 + $0x64] sm:$0xf]
    %v117 = vld [vmem:[#allocation6 + $0x68] sm:$0xf]
    %v118 = vld [vmem:[#allocation6 + $0x6c] sm:$0xf]
    %v119 = vld [vmem:[#allocation6 + $0x70] sm:$0xf]
    %v120 = vld [vmem:[#allocation6 + $0x74] sm:$0xf]
    %v121 = vld [vmem:[#allocation6 + $0x78] sm:$0xf]
    %v122 = vld [vmem:[#allocation6 + $0x7c] sm:$0xf]
    %v123 = vld [vmem:[#allocation6 + $0x80] sm:$0xf]
    %v124 = vld [vmem:[#allocation6 + $0x84] sm:$0xf]
    %v125 = vld [vmem:[#allocation6 + $0x88] sm:$0xf]
    %v126 = vld [vmem:[#allocation6 + $0x8c] sm:$0xf]
    %v127 = vld [vmem:[#allocation6 + $0x90] sm:$0xf]
    %v128 = vld [vmem:[#allocation6 + $0x94] sm:$0xf]
    %v129 = vld [vmem:[#allocation6 + $0x98] sm:$0xf]
    %v130 = vld [vmem:[#allocation6 + $0x9c] sm:$0xf]
    %v131 = vld [vmem:[#allocation6 + $0xa0] sm:$0xf]
    %v132 = vld [vmem:[#allocation6 + $0xa4] sm:$0xf]
    %v133 = vld [vmem:[#allocation6 + $0xa8] sm:$0xf]
    %v134 = vld [vmem:[#allocation6 + $0xac] sm:$0xf]
    %v135 = vld [vmem:[#allocation6 + $0xb0] sm:$0xf]
    %v136 = vld [vmem:[#allocation6 + $0xb4] sm:$0xf]
    %v137 = vld [vmem:[#allocation6 + $0xb8] sm:$0xf]
    %v138 = vld [vmem:[#allocation6 + $0xbc] sm:$0xf]
    %v139 = vld [vmem:[#allocation6 + $0xc0] sm:$0xf]
    %v140 = vld [vmem:[#allocation6 + $0xc4] sm:$0xf]
    %v141 = vld [vmem:[#allocation6 + $0xc8] sm:$0xf]
    %v142 = vld [vmem:[#allocation6 + $0xcc] sm:$0xf]
    %v143 = vld [vmem:[#allocation6 + $0xd0] sm:$0xf]
    %v144 = vld [vmem:[#allocation6 + $0xd4] sm:$0xf]
    %v145 = vld [vmem:[#allocation6 + $0xd8] sm:$0xf]
    %v146 = vld [vmem:[#allocation6 + $0xdc] sm:$0xf]
    %v147 = vld [vmem:[#allocation6 + $0xe0] sm:$0xf]
    %v148 = vld [vmem:[#allocation6 + $0xe4] sm:$0xf]
    %v149 = vld [vmem:[#allocation6 + $0xe8] sm:$0xf]
    %v150 = vld [vmem:[#allocation6 + $0xec] sm:$0xf]
    %v151 = vld [vmem:[#allocation6 + $0xf0] sm:$0xf]
    %v152 = vld [vmem:[#allocation6 + $0xf4] sm:$0xf]
    %v153 = vld [vmem:[#allocation6 + $0xf8] sm:$0xf]
    %v154 = vld [vmem:[#allocation6 + $0xfc] sm:$0xf]
    %v155 = vld [vmem:[#allocation6 + $0x100] sm:$0xf]
    %v156 = vld [vmem:[#allocation6 + $0x104] sm:$0xf]
    %v157 = vld [vmem:[#allocation6 + $0x108] sm:$0xf]
    %v158 = vld [vmem:[#allocation6 + $0x10c] sm:$0xf]
    %v159 = vld [vmem:[#allocation6 + $0x110] sm:$0xf]
    %v160 = vld [vmem:[#allocation6 + $0x114] sm:$0xf]
    %v161 = vld [vmem:[#allocation6 + $0x118] sm:$0xf]
    %v162 = vld [vmem:[#allocation6 + $0x11c] sm:$0xf]
    %v163 = vld [vmem:[#allocation6 + $0x120] sm:$0xf]
    %v164 = vld [vmem:[#allocation6 + $0x124] sm:$0xf]
    %v165 = vld [vmem:[#allocation6 + $0x128] sm:$0xf]
    %v166 = vld [vmem:[#allocation6 + $0x12c] sm:$0xf]
    %v167 = vld [vmem:[#allocation6 + $0x130] sm:$0xf]
    %v168 = vld [vmem:[#allocation6 + $0x134] sm:$0xf]
    %v169 = vld [vmem:[#allocation6 + $0x138] sm:$0xf]
    %v170 = vld [vmem:[#allocation6 + $0x13c] sm:$0xf]
    %v171 = vld [vmem:[#allocation6 + $0x140] sm:$0xf]
    %v172 = vld [vmem:[#allocation6 + $0x144] sm:$0xf]
    %v173 = vld [vmem:[#allocation6 + $0x148] sm:$0xf]
    %v174 = vld [vmem:[#allocation6 + $0x14c] sm:$0xf]
    %v175 = vld [vmem:[#allocation6 + $0x150] sm:$0xf]
    %v176 = vld [vmem:[#allocation6 + $0x154] sm:$0xf]
    %v177 = vld [vmem:[#allocation6 + $0x158] sm:$0xf]
    %v178 = vld [vmem:[#allocation6 + $0x15c] sm:$0xf]
    %v179 = vld [vmem:[#allocation6 + $0x160] sm:$0xf]
    %v180 = vld [vmem:[#allocation6 + $0x164] sm:$0xf]
    %v181 = vld [vmem:[#allocation6 + $0x168] sm:$0xf]
    %v182 = vld [vmem:[#allocation6 + $0x16c] sm:$0xf]
    %v183 = vld [vmem:[#allocation6 + $0x170] sm:$0xf]
    %v184 = vld [vmem:[#allocation6 + $0x174] sm:$0xf]
    %v185 = vld [vmem:[#allocation6 + $0x178] sm:$0xf]
    %v186 = vld [vmem:[#allocation6 + $0x17c] sm:$0xf]
    %v187 = vld [vmem:[#allocation6 + $0x180] sm:$0xf]
    %v188 = vld [vmem:[#allocation6 + $0x184] sm:$0xf]
    %v189 = vld [vmem:[%s2] sm:$0x1]
    %v191 = vlaneseq
    %v192 = vshrl.u32 %v191, 7
    %v193 = vsub.s32 0, %v192
    %v194 = vrot.slane %v189, %v193
    %v294 = vunpack.c.l.b16 %v91
    %v295 = vunpack.c.l.b16 %v92
    %v296 = vunpack.c.l.b16 %v93
    %v297 = vunpack.c.l.b16 %v94
    %v298 = vunpack.c.l.b16 %v95
    %v299 = vunpack.c.l.b16 %v96
    %v300 = vunpack.c.l.b16 %v97
    %v301 = vunpack.c.l.b16 %v98
    %v302 = vunpack.c.l.b16 %v99
    %v303 = vunpack.c.l.b16 %v100
    %v304 = vunpack.c.l.b16 %v101
    %v305 = vunpack.c.l.b16 %v102
    %v306 = vunpack.c.l.b16 %v103
    %v307 = vunpack.c.l.b16 %v104
    %v308 = vunpack.c.l.b16 %v105
    %v309 = vunpack.c.l.b16 %v106
    %v310 = vunpack.c.l.b16 %v107
    %v311 = vunpack.c.l.b16 %v108
    %v312 = vunpack.c.l.b16 %v109
    %v313 = vunpack.c.l.b16 %v110
    %v314 = vunpack.c.l.b16 %v111
    %v315 = vunpack.c.l.b16 %v112
    %v316 = vunpack.c.l.b16 %v113
    %v317 = vunpack.c.l.b16 %v114
    %v318 = vunpack.c.l.b16 %v115
    %v319 = vunpack.c.l.b16 %v116
    %v320 = vunpack.c.l.b16 %v117
    %v321 = vunpack.c.l.b16 %v118
    %v322 = vunpack.c.l.b16 %v119
    %v323 = vunpack.c.l.b16 %v120
    %v324 = vunpack.c.l.b16 %v121
    %v325 = vunpack.c.l.b16 %v122
    %v326 = vunpack.c.l.b16 %v123
    %v327 = vunpack.c.l.b16 %v124
    %v328 = vunpack.c.l.b16 %v125
    %v329 = vunpack.c.l.b16 %v126
    %v330 = vunpack.c.l.b16 %v127
    %v331 = vunpack.c.l.b16 %v128
    %v332 = vunpack.c.l.b16 %v129
    %v333 = vunpack.c.l.b16 %v130
    %v334 = vunpack.c.l.b16 %v131
    %v335 = vunpack.c.l.b16 %v132
    %v336 = vunpack.c.l.b16 %v133
    %v337 = vunpack.c.l.b16 %v134
    %v338 = vunpack.c.l.b16 %v135
    %v339 = vunpack.c.l.b16 %v136
    %v340 = vunpack.c.l.b16 %v137
    %v341 = vunpack.c.l.b16 %v138
    %v342 = vunpack.c.l.b16 %v139
    %v343 = vunpack.c.l.b16 %v140
    %v344 = vunpack.c.l.b16 %v141
    %v345 = vunpack.c.l.b16 %v142
    %v346 = vunpack.c.l.b16 %v143
    %v347 = vunpack.c.l.b16 %v144
    %v348 = vunpack.c.l.b16 %v145
    %v349 = vunpack.c.l.b16 %v146
    %v350 = vunpack.c.l.b16 %v147
    %v351 = vunpack.c.l.b16 %v148
    %v352 = vunpack.c.l.b16 %v149
    %v353 = vunpack.c.l.b16 %v150
    %v354 = vunpack.c.l.b16 %v151
    %v355 = vunpack.c.l.b16 %v152
    %v356 = vunpack.c.l.b16 %v153
    %v357 = vunpack.c.l.b16 %v154
    %v358 = vunpack.c.l.b16 %v155
    %v359 = vunpack.c.l.b16 %v156
    %v360 = vunpack.c.l.b16 %v157
    %v361 = vunpack.c.l.b16 %v158
    %v362 = vunpack.c.l.b16 %v159
    %v363 = vunpack.c.l.b16 %v160
    %v364 = vunpack.c.l.b16 %v161
    %v365 = vunpack.c.l.b16 %v162
    %v366 = vunpack.c.l.b16 %v163
    %v367 = vunpack.c.l.b16 %v164
    %v368 = vunpack.c.l.b16 %v165
    %v369 = vunpack.c.l.b16 %v166
    %v370 = vunpack.c.l.b16 %v167
    %v371 = vunpack.c.l.b16 %v168
    %v372 = vunpack.c.l.b16 %v169
    %v373 = vunpack.c.l.b16 %v170
    %v374 = vunpack.c.l.b16 %v171
    %v375 = vunpack.c.l.b16 %v172
    %v376 = vunpack.c.l.b16 %v173
    %v377 = vunpack.c.l.b16 %v174
    %v378 = vunpack.c.l.b16 %v175
    %v379 = vunpack.c.l.b16 %v176
    %v380 = vunpack.c.l.b16 %v177
    %v381 = vunpack.c.l.b16 %v178
    %v382 = vunpack.c.l.b16 %v179
    %v383 = vunpack.c.l.b16 %v180
    %v384 = vunpack.c.l.b16 %v181
    %v385 = vunpack.c.l.b16 %v182
    %v386 = vunpack.c.l.b16 %v183
    %v387 = vunpack.c.l.b16 %v184
    %v388 = vunpack.c.l.b16 %v185
    %v389 = vunpack.c.l.b16 %v186
    %v390 = vunpack.c.l.b16 %v187
    %v391 = vunpack.c.l.b16 %v188
    %v392 = vpack.c.b16 %v295, %v294
    %v393 = vpack.c.b16 %v297, %v296
    %v394 = vpack.c.b16 %v299, %v298
    %v395 = vpack.c.b16 %v301, %v300
    %v396 = vpack.c.b16 %v303, %v302
    %v397 = vpack.c.b16 %v305, %v304
    %v398 = vpack.c.b16 %v307, %v306
    %v399 = vpack.c.b16 %v309, %v308
    %v400 = vpack.c.b16 %v311, %v310
    %v401 = vpack.c.b16 %v313, %v312
    %v402 = vpack.c.b16 %v315, %v314
    %v403 = vpack.c.b16 %v317, %v316
    %v404 = vpack.c.b16 %v319, %v318
    %v405 = vpack.c.b16 %v321, %v320
    %v406 = vpack.c.b16 %v323, %v322
    %v407 = vpack.c.b16 %v325, %v324
    %v408 = vpack.c.b16 %v327, %v326
    %v409 = vpack.c.b16 %v329, %v328
    %v410 = vpack.c.b16 %v331, %v330
    %v411 = vpack.c.b16 %v333, %v332
    %v412 = vpack.c.b16 %v335, %v334
    %v413 = vpack.c.b16 %v337, %v336
    %v414 = vpack.c.b16 %v339, %v338
    %v415 = vpack.c.b16 %v341, %v340
    %v416 = vpack.c.b16 %v343, %v342
    %v417 = vpack.c.b16 %v345, %v344
    %v418 = vpack.c.b16 %v347, %v346
    %v419 = vpack.c.b16 %v349, %v348
    %v420 = vpack.c.b16 %v351, %v350
    %v421 = vpack.c.b16 %v353, %v352
    %v422 = vpack.c.b16 %v355, %v354
    %v423 = vpack.c.b16 %v357, %v356
    %v424 = vpack.c.b16 %v359, %v358
    %v425 = vpack.c.b16 %v361, %v360
    %v426 = vpack.c.b16 %v363, %v362
    %v427 = vpack.c.b16 %v365, %v364
    %v428 = vpack.c.b16 %v367, %v366
    %v429 = vpack.c.b16 %v369, %v368
    %v430 = vpack.c.b16 %v371, %v370
    %v431 = vpack.c.b16 %v373, %v372
    %v432 = vpack.c.b16 %v375, %v374
    %v433 = vpack.c.b16 %v377, %v376
    %v434 = vpack.c.b16 %v379, %v378
    %v435 = vpack.c.b16 %v381, %v380
    %v436 = vpack.c.b16 %v383, %v382
    %v437 = vpack.c.b16 %v385, %v384
    %v438 = vpack.c.b16 %v387, %v386
    %v439 = vpack.c.b16 %v389, %v388
    %v440 = vpack.c.b16 %v391, %v390
    %vm490 = vcmask 130048
    %v492 = vsel %vm490, %v90, 0
    %494 = vmatprep.subr.bf16.mxu0 0
    %495 = vmatpush1.bf16.msra.mxu0 %v392
    %496 = vmatprep.subr.bf16.mxu0 0
    %497 = vmatpush1.bf16.msra.mxu0 %v393
    %498 = vmatprep.subr.bf16.mxu0 0
    %499 = vmatpush1.bf16.msra.mxu0 %v394
    %500 = vmatprep.subr.bf16.mxu0 0
    %501 = vmatpush1.bf16.msra.mxu0 %v395
    %502 = vmatprep.subr.bf16.mxu0 0
    %503 = vmatpush1.bf16.msra.mxu0 %v396
    %504 = vmatprep.subr.bf16.mxu0 0
    %505 = vmatpush1.bf16.msra.mxu0 %v397
    %506 = vmatprep.subr.bf16.mxu0 0
    %507 = vmatpush1.bf16.msra.mxu0 %v398
    %508 = vmatprep.subr.bf16.mxu0 0
    %509 = vmatpush1.bf16.msra.mxu0 %v399
    %510 = vmatprep.subr.bf16.mxu0 0
    %511 = vmatpush1.bf16.msra.mxu0 %v400
    %512 = vmatprep.subr.bf16.mxu0 0
    %513 = vmatpush1.bf16.msra.mxu0 %v401
    %514 = vmatprep.subr.bf16.mxu0 0
    %515 = vmatpush1.bf16.msra.mxu0 %v402
    %516 = vmatprep.subr.bf16.mxu0 0
    %517 = vmatpush1.bf16.msra.mxu0 %v403
    %518 = vmatprep.subr.bf16.mxu0 0
    %519 = vmatpush1.bf16.msra.mxu0 %v404
    %520 = vmatprep.subr.bf16.mxu0 0
    %521 = vmatpush1.bf16.msra.mxu0 %v405
    %522 = vmatprep.subr.bf16.mxu0 0
    %523 = vmatpush1.bf16.msra.mxu0 %v406
    %524 = vmatprep.subr.bf16.mxu0 0
    %525 = vmatpush1.bf16.msra.mxu0 %v407
    %526 = vmatprep.mubr.bf16.mxu0 %v85
    %527 = vmatmul.mubr.bf16.gmra.mrb[0].mxu0 %v84
    %v528 = vpop.f32.mrb[0].mxu0
    %v529 = vadd.f32 %v194, %v528
    %v530 = vpop.f32.mrb[0].mxu0
    %v531 = vpop.f32.mrb[0].mxu0
    %v532 = vadd.f32 %v194, %v531
    %v533 = vpop.f32.mrb[0].mxu0
    %534 = vdwg.mxu0
    %535 = vmatprep.subr.bf16.mxu0 0
    %536 = vmatpush1.bf16.msra.mxu0 %v408
    %537 = vmatprep.subr.bf16.mxu0 0
    %538 = vmatpush1.bf16.msra.mxu0 %v409
    %539 = vmatprep.subr.bf16.mxu0 0
    %540 = vmatpush1.bf16.msra.mxu0 %v410
    %541 = vmatprep.subr.bf16.mxu0 0
    %542 = vmatpush1.bf16.msra.mxu0 %v411
    %543 = vmatprep.subr.bf16.mxu0 0
    %544 = vmatpush1.bf16.msra.mxu0 %v412
    %545 = vmatprep.subr.bf16.mxu0 0
    %546 = vmatpush1.bf16.msra.mxu0 %v413
    %547 = vmatprep.subr.bf16.mxu0 0
    %548 = vmatpush1.bf16.msra.mxu0 %v414
    %549 = vmatprep.subr.bf16.mxu0 0
    %550 = vmatpush1.bf16.msra.mxu0 %v415
    %551 = vmatprep.subr.bf16.mxu0 0
    %552 = vmatpush1.bf16.msra.mxu0 %v416
    %553 = vmatprep.subr.bf16.mxu0 0
    %554 = vmatpush1.bf16.msra.mxu0 %v417
    %555 = vmatprep.subr.bf16.mxu0 0
    %556 = vmatpush1.bf16.msra.mxu0 %v418
    %557 = vmatprep.subr.bf16.mxu0 0
    %558 = vmatpush1.bf16.msra.mxu0 %v419
    %559 = vmatprep.subr.bf16.mxu0 0
    %560 = vmatpush1.bf16.msra.mxu0 %v420
    %561 = vmatprep.subr.bf16.mxu0 0
    %562 = vmatpush1.bf16.msra.mxu0 %v421
    %563 = vmatprep.subr.bf16.mxu0 0
    %564 = vmatpush1.bf16.msra.mxu0 %v422
    %565 = vmatprep.subr.bf16.mxu0 0
    %566 = vmatpush1.bf16.msra.mxu0 %v423
    %567 = vmatprep.mubr.bf16.mxu0 %v87
    %568 = vmatmul.mubr.bf16.gmra.mrb[0].mxu0 %v86
    %v569 = vpop.f32.mrb[0].mxu0
    %v570 = vadd.f32 %v529, %v569
    %v571 = vpop.f32.mrb[0].mxu0
    %v572 = vpop.f32.mrb[0].mxu0
    %v573 = vadd.f32 %v532, %v572
    %v574 = vpop.f32.mrb[0].mxu0
    %575 = vdwg.mxu0
    %576 = vmatprep.subr.bf16.mxu0 0
    %577 = vmatpush1.bf16.msra.mxu0 %v424
    %578 = vmatprep.subr.bf16.mxu0 0
    %579 = vmatpush1.bf16.msra.mxu0 %v425
    %580 = vmatprep.subr.bf16.mxu0 0
    %581 = vmatpush1.bf16.msra.mxu0 %v426
    %582 = vmatprep.subr.bf16.mxu0 0
    %583 = vmatpush1.bf16.msra.mxu0 %v427
    %584 = vmatprep.subr.bf16.mxu0 0
    %585 = vmatpush1.bf16.msra.mxu0 %v428
    %586 = vmatprep.subr.bf16.mxu0 0
    %587 = vmatpush1.bf16.msra.mxu0 %v429
    %588 = vmatprep.subr.bf16.mxu0 0
    %589 = vmatpush1.bf16.msra.mxu0 %v430
    %590 = vmatprep.subr.bf16.mxu0 0
    %591 = vmatpush1.bf16.msra.mxu0 %v431
    %592 = vmatprep.subr.bf16.mxu0 0
    %593 = vmatpush1.bf16.msra.mxu0 %v432
    %594 = vmatprep.subr.bf16.mxu0 0
    %595 = vmatpush1.bf16.msra.mxu0 %v433
    %596 = vmatprep.subr.bf16.mxu0 0
    %597 = vmatpush1.bf16.msra.mxu0 %v434
    %598 = vmatprep.subr.bf16.mxu0 0
    %599 = vmatpush1.bf16.msra.mxu0 %v435
    %600 = vmatprep.subr.bf16.mxu0 0
    %601 = vmatpush1.bf16.msra.mxu0 %v436
    %602 = vmatprep.subr.bf16.mxu0 0
    %603 = vmatpush1.bf16.msra.mxu0 %v437
    %604 = vmatprep.subr.bf16.mxu0 0
    %605 = vmatpush1.bf16.msra.mxu0 %v438
    %606 = vmatprep.subr.bf16.mxu0 0
    %607 = vmatpush1.bf16.msra.mxu0 %v439
    %608 = vmatprep.mubr.bf16.mxu0 %v89
    %609 = vmatmul.mubr.bf16.gmra.mrb[0].mxu0 %v88
    %v610 = vpop.f32.mrb[0].mxu0
    %v611 = vadd.f32 %v570, %v610
    %v612 = vpop.f32.mrb[0].mxu0
    %v613 = vpop.f32.mrb[0].mxu0
    %v614 = vadd.f32 %v573, %v613
    %v615 = vpop.f32.mrb[0].mxu0
    %616 = vdwg.mxu0
    %617 = vmatprep.subr.bf16.mxu0 0
    %618 = vmatpush1.bf16.msra.mxu0 %v440
    %619 = vmatprep.subr.bf16.mxu0 0
    %620 = vmatpush1.bf16.msra.mxu0 0
    %621 = vmatprep.subr.bf16.mxu0 0
    %622 = vmatpush1.bf16.msra.mxu0 0
    %623 = vmatprep.subr.bf16.mxu0 0
    %624 = vmatpush1.bf16.msra.mxu0 0
    %625 = vmatprep.subr.bf16.mxu0 0
    %626 = vmatpush1.bf16.msra.mxu0 0
    %627 = vmatprep.subr.bf16.mxu0 0
    %628 = vmatpush1.bf16.msra.mxu0 0
    %629 = vmatprep.subr.bf16.mxu0 0
    %630 = vmatpush1.bf16.msra.mxu0 0
    %631 = vmatprep.subr.bf16.mxu0 0
    %632 = vmatpush1.bf16.msra.mxu0 0
    %633 = vmatprep.subr.bf16.mxu0 0
    %634 = vmatpush1.bf16.msra.mxu0 0
    %635 = vmatprep.subr.bf16.mxu0 0
    %636 = vmatpush1.bf16.msra.mxu0 0
    %637 = vmatprep.subr.bf16.mxu0 0
    %638 = vmatpush1.bf16.msra.mxu0 0
    %639 = vmatprep.subr.bf16.mxu0 0
    %640 = vmatpush1.bf16.msra.mxu0 0
    %641 = vmatprep.subr.bf16.mxu0 0
    %642 = vmatpush1.bf16.msra.mxu0 0
    %643 = vmatprep.subr.bf16.mxu0 0
    %644 = vmatpush1.bf16.msra.mxu0 0
    %645 = vmatprep.subr.bf16.mxu0 0
    %646 = vmatpush1.bf16.msra.mxu0 0
    %647 = vmatprep.subr.bf16.mxu0 0
    %648 = vmatpush1.bf16.msra.mxu0 0
    %649 = vmatprep.mubr.bf16.mxu0 0
    %650 = vmatmul.mubr.bf16.gmra.mrb[0].mxu0 %v492
    %v651 = vpop.f32.mrb[0].mxu0
    %v652 = vadd.f32 %v611, %v651
    %v653 = vpop.f32.mrb[0].mxu0
    %v654 = vpop.f32.mrb[0].mxu0
    %v655 = vadd.f32 %v614, %v654
    %v656 = vpop.f32.mrb[0].mxu0
    %657 = vdwg.mxu0
    %v658 = vmul.f32 %v652, 0.2
    %v659 = vmul.f32 %v655, 0.2
    %v660 = vmax.f32 %v652, %v658
    %v661 = vmax.f32 %v655, %v659
    %v662 = vpack.c.bf16 %v661, %v660
    %v663 = vld [vmem:[#allocation8] sm:$0xf]
    %v664 = vld [vmem:[#allocation8 + $0x4] sm:$0xf]
    %v665 = vld [vmem:[#allocation8 + $0x8] sm:$0xf]
    %v666 = vld [vmem:[#allocation8 + $0xc] sm:$0xf]
    %v667 = vld [vmem:[#allocation8 + $0x10] sm:$0xf]
    %v668 = vld [vmem:[#allocation8 + $0x14] sm:$0xf]
    %v669 = vld [vmem:[#allocation8 + $0x18] sm:$0xf]
    %v670 = vld [vmem:[#allocation8 + $0x1c] sm:$0xf]
    %v671 = vld [vmem:[#allocation8 + $0x20] sm:$0xf]
    %v672 = vld [vmem:[#allocation8 + $0x24] sm:$0xf]
    %v673 = vld [vmem:[#allocation8 + $0x28] sm:$0xf]
    %v674 = vld [vmem:[#allocation8 + $0x2c] sm:$0xf]
    %v675 = vld [vmem:[#allocation8 + $0x30] sm:$0xf]
    %v676 = vld [vmem:[#allocation8 + $0x34] sm:$0xf]
    %v677 = vld [vmem:[#allocation8 + $0x38] sm:$0xf]
    %v678 = vld [vmem:[#allocation8 + $0x3c] sm:$0xf]
    %v679 = vld [vmem:[%s4] sm:$0x1]
    %v681 = vlaneseq
    %v682 = vshrl.u32 %v681, 7
    %v683 = vsub.s32 0, %v682
    %v684 = vrot.slane %v679, %v683
    %v702 = vunpack.c.l.b16 %v663
    %v703 = vunpack.c.l.b16 %v664
    %v704 = vunpack.c.l.b16 %v665
    %v705 = vunpack.c.l.b16 %v666
    %v706 = vunpack.c.l.b16 %v667
    %v707 = vunpack.c.l.b16 %v668
    %v708 = vunpack.c.l.b16 %v669
    %v709 = vunpack.c.l.b16 %v670
    %v710 = vunpack.c.l.b16 %v671
    %v711 = vunpack.c.l.b16 %v672
    %v712 = vunpack.c.l.b16 %v673
    %v713 = vunpack.c.l.b16 %v674
    %v714 = vunpack.c.l.b16 %v675
    %v715 = vunpack.c.l.b16 %v676
    %v716 = vunpack.c.l.b16 %v677
    %v717 = vunpack.c.l.b16 %v678
    %v718 = vpack.c.b16 %v703, %v702
    %v719 = vpack.c.b16 %v705, %v704
    %v720 = vpack.c.b16 %v707, %v706
    %v721 = vpack.c.b16 %v709, %v708
    %v722 = vpack.c.b16 %v711, %v710
    %v723 = vpack.c.b16 %v713, %v712
    %v724 = vpack.c.b16 %v715, %v714
    %v725 = vpack.c.b16 %v717, %v716
    %734 = vmatprep.subr.bf16.mxu0 0
    %735 = vmatpush1.bf16.msra.mxu0 %v718
    %736 = vmatprep.subr.bf16.mxu0 0
    %737 = vmatpush1.bf16.msra.mxu0 %v719
    %738 = vmatprep.subr.bf16.mxu0 0
    %739 = vmatpush1.bf16.msra.mxu0 %v720
    %740 = vmatprep.subr.bf16.mxu0 0
    %741 = vmatpush1.bf16.msra.mxu0 %v721
    %742 = vmatprep.subr.bf16.mxu0 0
    %743 = vmatpush1.bf16.msra.mxu0 %v722
    %744 = vmatprep.subr.bf16.mxu0 0
    %745 = vmatpush1.bf16.msra.mxu0 %v723
    %746 = vmatprep.subr.bf16.mxu0 0
    %747 = vmatpush1.bf16.msra.mxu0 %v724
    %748 = vmatprep.subr.bf16.mxu0 0
    %749 = vmatpush1.bf16.msra.mxu0 %v725
    %750 = vmatprep.subr.bf16.mxu0 0
    %751 = vmatpush1.bf16.msra.mxu0 0
    %752 = vmatprep.subr.bf16.mxu0 0
    %753 = vmatpush1.bf16.msra.mxu0 0
    %754 = vmatprep.subr.bf16.mxu0 0
    %755 = vmatpush1.bf16.msra.mxu0 0
    %756 = vmatprep.subr.bf16.mxu0 0
    %757 = vmatpush1.bf16.msra.mxu0 0
    %758 = vmatprep.subr.bf16.mxu0 0
    %759 = vmatpush1.bf16.msra.mxu0 0
    %760 = vmatprep.subr.bf16.mxu0 0
    %761 = vmatpush1.bf16.msra.mxu0 0
    %762 = vmatprep.subr.bf16.mxu0 0
    %763 = vmatpush1.bf16.msra.mxu0 0
    %764 = vmatprep.subr.bf16.mxu0 0
    %765 = vmatpush1.bf16.msra.mxu0 0
    %766 = vmatprep.mubr.bf16.mxu0 0
    %767 = vmatmul.mubr.bf16.gmra.mrb[0].mxu0 %v662
    %v768 = vpop.f32.mrb[0].mxu0
    %v769 = vadd.f32 %v684, %v768
    %v770 = vpop.f32.mrb[0].mxu0
    %v771 = vpop.f32.mrb[0].mxu0
    %v772 = vadd.f32 %v684, %v771
    %v773 = vpop.f32.mrb[0].mxu0
    %774 = vdwg.mxu0
    %v775 = vmul.f32 %v769, 0.2
    %v776 = vmul.f32 %v772, 0.2
    %v777 = vmax.f32 %v769, %v775
    %v778 = vmax.f32 %v772, %v776
    %v779 = vld [vmem:[%s5] sm:$0x1]
    %v781 = vlaneseq
    %v782 = vshrl.u32 %v781, 7
    %v783 = vsub.s32 0, %v782
    %v784 = vrot.slane %v779, %v783
    %v786 = vmul.f32 %v777, %v784
    %v787 = vmul.f32 %v778, %v784
    %788 = vadd.xlane.f32.xlu0 %v786
    %v789 = vpop.xlane.xlu0 %788
    %790 = vadd.xlane.f32.xlu0 %v787
    %v791 = vpop.xlane.xlu0 %790
    %s792 = sld [smem:[#allocation2]]
    %v793 = vstv %s792
    %v794 = vadd.f32 %v789, %v793
    %v795 = vadd.f32 %v791, %v793
    %v798 = vlaneseq
    %v799 = vand.u32 %v798, 127
    %v800 = vlaneseq
    %v801 = vshrl.u32 %v800, 7
    %v802 = vsub.s32 %v799, %v801
    %v803 = vrot.slane %v794, %v802
    %v804 = vadd.s32 %v799, 4294967288
    %v805 = vlaneseq
    %v806 = vshrl.u32 %v805, 7
    %v807 = vsub.s32 %v804, %v806
    %v808 = vrot.slane %v795, %v807
    %vm809 = vcmask 130112
    %v810 = vsel %vm809, %v808, %v803
    %vm812 = vcmask 122880
    %813 = vst.msk [vmem:[#allocation9] sm:$0x1] %vm812, %v810
    // Predicated region
    $region42: #{tpu_custom_call.1} parent=1 // pred_check
      _
    $region43: #{tpu_custom_call.1} parent=1 // pred_check_branch
      %815 = sbr.rel (0) target = $region45
    $region44: #{tpu_custom_call.1} parent=1 // pred_region
      %s817 = ssub.s32 16, 16
      %818 = vsyncadd [#allocation5], %s817
      %s820 = sshll.u32 [#allocation9], 4
      %s821 = int_to_ptr.vmem [resolvable:$true] %s820
      %823 = dma.vmem_to_hbm [thread:$0]  %s821, 16, %s7, [#allocation5]
    $region45: #{tpu_custom_call.1} parent=1 // pred_fallthru
      _
    // Predicated region
    $region46: #{tpu_custom_call.1} parent=1 // pred_check
      _
    $region47: #{tpu_custom_call.1} parent=1 // pred_check_branch
      %825 = sbr.rel (0) target = $region49
    $region48: #{tpu_custom_call.1} parent=1 // pred_region
      %826 = dma.done [#allocation5], 16
    $region49: #{tpu_custom_call.1} parent=1 // pred_fallthru
      _
    %827 = vsyncpa [#allocation4], 1
    %828 = vsyncpa [#allocation7], 1
    %829 = vsyncpa [#allocation5], 1

</llo_original>
